<compile_context>
chip_gen: v5e
topology: v5e:2x2
jax: 0.10.0
libtpu: 0.0.40
codegen_flags: <defaults>
</compile_context>

<pallas_src>
import functools

import jax
import jax.numpy as jnp
from jax.experimental import pallas as pl
from jax.experimental.pallas import tpu as pltpu


# --------------------------------------------------------------------------
# Kernel
# --------------------------------------------------------------------------
def _acmodel_kernel(x_ref, wh_ref, bh_ref, whead_ref, out_ref, *,
                    n_actions, softmax_dim):
    """Fused hidden layer + fused (pi|v) head + softmax; lane-dense output."""
    x = x_ref[...]                                                  # [TB, S]

    # Hidden layer + ReLU (MXU, f32 accumulation).  bh also pins lane 127 to
    # 1.0 so the head biases ride along in whead row 127.
    h = jnp.dot(x, wh_ref[...], preferred_element_type=jnp.float32) + bh_ref[...]
    h = jnp.maximum(h, 0.0)                                         # [TB, 128]

    # Fused head (biases folded): lanes 0..A-1 = pi logits, lane A = v.
    logits = jnp.dot(h, whead_ref[...],
                     preferred_element_type=jnp.float32)            # [TB, 128]

    lane = jax.lax.broadcasted_iota(jnp.int32, logits.shape, 1)

    if softmax_dim == 0:
        # Softmax over the batch axis (columns independent).
        m = jnp.max(logits, axis=0, keepdims=True)
        e = jnp.exp(logits - m)
        denom = jnp.sum(e, axis=0, keepdims=True)
    else:
        # Per-row softmax: mask padded/value lanes so they don't contribute.
        masked = jnp.where(lane < n_actions, logits, -jnp.inf)
        m = jnp.max(masked, axis=1, keepdims=True)
        e = jnp.exp(masked - m)
        denom = jnp.sum(e, axis=1, keepdims=True)

    # Exact divide (not approx reciprocal): keeps sum(pi)==1 for PPO ratios.
    pi = e / denom

    # Lane-dense slab: pi in lanes < A, raw value in lane A, zeros elsewhere.
    out_ref[...] = jnp.where(
        lane == n_actions, logits,
        jnp.where(lane < n_actions, pi, 0.0)).astype(out_ref.dtype)


# --------------------------------------------------------------------------
# Generation-aware configuration
# --------------------------------------------------------------------------
def _round_up(x, m):
    return ((x + m - 1) // m) * m


def _tpu_config():
    """Returns (tensorcores_per_chip, safe vmem_limit_bytes)."""
    kind = ""
    try:
        kind = jax.devices()[0].device_kind.lower()
    except Exception:
        pass
    num_cores = 2 if "v7" in kind else 1
    # Physical VMEM per TensorCore: 128 MiB (v5e/v6e), 64 MiB (v7x).
    vmem_phys = 64 * 1024 * 1024 if "v7" in kind else 128 * 1024 * 1024
    try:  # prefer an exact query when available
        info = pltpu.get_tpu_info()
        vmem_phys = int(getattr(info, "vmem_capacity_bytes", vmem_phys))
    except Exception:
        pass
    vmem_limit = min(int(0.75 * vmem_phys), 96 * 1024 * 1024)
    return num_cores, vmem_limit


# --------------------------------------------------------------------------
# Wrapper
# --------------------------------------------------------------------------
def acmodel_forward(state, packed_params, n_actions, softmax_dim=0,
                    batch_tile=1024):
    """Fused AC forward. Returns (pi_probs [B, A], v [B, 1])."""
    wh_p, bh_p, whead = packed_params
    B, S = state.shape
    h_pad, out_w = whead.shape

    kernel = functools.partial(_acmodel_kernel, n_actions=n_actions,
                               softmax_dim=softmax_dim)
    num_cores, vmem_limit = _tpu_config()

    # Advisory cost hint so XLA can overlap this tiny call with the PPO graph.
    cost = pl.CostEstimate(
        flops=int(2 * B * (S * h_pad + h_pad * out_w)),
        transcendentals=int(B * out_w),
        bytes_accessed=int(4 * (B * S + B * out_w
                                + wh_p.size + bh_p.size + whead.size)),
    )

    if softmax_dim == 0:
        # Softmax reduces ACROSS the batch -> whole batch in one VMEM block.
        # TODO(synk): tile as a two-pass (max/sum carry) batch reduction for
        # batches too large for one block even with the raised VMEM limit.
        out = pl.pallas_call(
            kernel,
            out_shape=jax.ShapeDtypeStruct((B, out_w), jnp.float32),
            in_specs=[pl.BlockSpec(memory_space=pltpu.MemorySpace.VMEM)] * 4,
            out_specs=pl.BlockSpec(memory_space=pltpu.MemorySpace.VMEM),
            compiler_params=pltpu.CompilerParams(vmem_limit_bytes=vmem_limit),
            cost_estimate=cost,
        )(state, wh_p, bh_p, whead)
    else:
        # Per-row softmax: 1-D batch grid, weights resident (constant
        # index_map, DMA'd once), ragged boundary handled by Pallas masking
        # (no batch padding, no out[:B] copy).
        tile = _round_up(min(batch_tile, B), 8)
        if num_cores > 1 and B > 16 * num_cores:
            # Ensure >= num_cores grid steps so "parallel" shards across TCs.
            tile = min(tile, _round_up(pl.cdiv(B, num_cores), 8))
        nb = pl.cdiv(B, tile)
        out = pl.pallas_call(
            kernel,
            out_shape=jax.ShapeDtypeStruct((B, out_w), jnp.float32),
            grid=(nb,),
            in_specs=[
                pl.BlockSpec((tile, S), lambda i: (i, 0)),      # state tile
                pl.BlockSpec(wh_p.shape, lambda i: (0, 0)),     # resident W_h
                pl.BlockSpec(bh_p.shape, lambda i: (0, 0)),     # resident b_h
                pl.BlockSpec(whead.shape, lambda i: (0, 0)),    # resident head
            ],
            out_specs=pl.BlockSpec((tile, out_w), lambda i: (i, 0)),
            compiler_params=pltpu.CompilerParams(
                dimension_semantics=("parallel",),
                vmem_limit_bytes=vmem_limit,
            ),
            cost_estimate=cost,
        )(state, wh_p, bh_p, whead)

    pi = out[:, :n_actions]
    v = out[:, n_actions:n_actions + 1]
    return pi, v


# --------------------------------------------------------------------------
# Parameter construction
# --------------------------------------------------------------------------
def init_params(key, state_dim, n_actions, hidden_dim=48):
    """PyTorch nn.Linear-style init (uniform +/- 1/sqrt(fan_in)),
    weights stored as [in, out]."""
    ks = jax.random.split(key, 6)

    def lin(kw, kb, fan_in, fan_out):
        bound = 1.0 / jnp.sqrt(jnp.float32(fan_in))
        w = jax.random.uniform(kw, (fan_in, fan_out), jnp.float32, -bound, bound)
        b = jax.random.uniform(kb, (fan_out,), jnp.float32, -bound, bound)
        return w, b

    wh, bh = lin(ks[0], ks[1], state_dim, hidden_dim)
    wpi, bpi = lin(ks[2], ks[3], hidden_dim, n_actions)
    wv, bv = lin(ks[4], ks[5], hidden_dim, 1)
    return (wh, bh, wpi, bpi, wv, bv)


def pack_params(params, hidden_pad=128, out_pad=128):
    """Zero-pad hidden dim to 128, fuse (fc_pi | fc_v) into one head, and fold
    the head biases into the head matmul via a pinned hidden lane."""
    wh, bh, wpi, bpi, wv, bv = params
    S, H = wh.shape
    A = wpi.shape[1]
    assert A + 1 <= out_pad
    assert H <= hidden_pad - 1        # need one spare lane for the pinned 1.0
    one_lane = hidden_pad - 1

    wh_p = jnp.zeros((S, hidden_pad), jnp.float32).at[:, :H].set(wh)
    # Hidden bias; bias of the pinned lane = 1.0 so h[:, one_lane] == relu(1) == 1.
    bh_p = (jnp.zeros((1, hidden_pad), jnp.float32)
            .at[0, :H].set(bh)
            .at[0, one_lane].set(1.0))

    whead = (jnp.zeros((hidden_pad, out_pad), jnp.float32)
             .at[:H, :A].set(wpi)
             .at[:H, A].set(wv[:, 0])
             .at[one_lane, :A].set(bpi)    # head biases via the pinned lane
             .at[one_lane, A].set(bv[0]))
    return (wh_p, bh_p, whead)


# --------------------------------------------------------------------------
# Plain-JAX reference
# --------------------------------------------------------------------------
def _reference(state, params, softmax_dim):
    wh, bh, wpi, bpi, wv, bv = params
    hi = jax.lax.Precision.HIGHEST
    h = jnp.maximum(jnp.dot(state, wh, precision=hi) + bh, 0.0)
    pi = jax.nn.softmax(jnp.dot(h, wpi, precision=hi) + bpi, axis=softmax_dim)
    v = jnp.dot(h, wv, precision=hi) + bv
    return pi, v


# --------------------------------------------------------------------------
if __name__ == "__main__":
    state_dim, n_actions, hidden_dim = 4, 6, 48

    key = jax.random.PRNGKey(0)
    k_param, k_state, k_big = jax.random.split(key, 3)
    params = init_params(k_param, state_dim, n_actions, hidden_dim)
    packed = pack_params(params)

    # Small batch, both softmax dims.
    batch = 2
    state = jax.random.normal(k_state, (batch, state_dim), jnp.float32)

    pi1, v1 = acmodel_forward(state, packed, n_actions, softmax_dim=1)
    pi0, v0 = acmodel_forward(state, packed, n_actions, softmax_dim=0)
    jax.block_until_ready((pi1, v1, pi0, v0))

    ref_pi1, ref_v1 = _reference(state, params, 1)
    ref_pi0, ref_v0 = _reference(state, params, 0)
    assert jnp.allclose(pi1, ref_pi1, atol=1e-4, rtol=1e-4), "pi (dim=1) mismatch"
    assert jnp.allclose(v1, ref_v1, atol=1e-4, rtol=1e-4), "v (dim=1) mismatch"
    assert jnp.allclose(pi0, ref_pi0, atol=1e-4, rtol=1e-4), "pi (dim=0) mismatch"
    assert jnp.allclose(v0, ref_v0, atol=1e-4, rtol=1e-4), "v (dim=0) mismatch"

    # Larger, ragged batch exercises the gridded path (boundary-block masking,
    # no pad / no [:B] slice) and the multi-TensorCore split on v7x.
    big_batch = 1000
    state_big = jax.random.normal(k_big, (big_batch, state_dim), jnp.float32)
    pi_b, v_b = acmodel_forward(state_big, packed, n_actions,
                                softmax_dim=1, batch_tile=1024)
    jax.block_until_ready((pi_b, v_b))
    ref_pi_b, ref_v_b = _reference(state_big, params, 1)
    assert jnp.allclose(pi_b, ref_pi_b, atol=1e-4, rtol=1e-4), "big pi mismatch"
    assert jnp.allclose(v_b, ref_v_b, atol=1e-4, rtol=1e-4), "big v mismatch"

    print("KERNEL_OK")
</pallas_src>

<mosaic_0001>
module attributes {stable_mosaic.version = 11 : i64} {
  func.func @_acmodel_kernel(%arg0: i32, %arg1: memref<8x4xf32, #tpu.memory_space<vmem>>, %arg2: memref<4x128xf32, #tpu.memory_space<vmem>>, %arg3: memref<1x128xf32, #tpu.memory_space<vmem>>, %arg4: memref<128x128xf32, #tpu.memory_space<vmem>>, %arg5: memref<8x128xf32, #tpu.memory_space<vmem>>) attributes {dimension_semantics = [#tpu.dimension_semantics<parallel>], iteration_bounds = array<i64: 1>, scalar_prefetch = 0 : i64, scratch_operands = 0 : i64, tpu.core_type = #tpu.core_type<tc>, window_params = [{transform_indices = @transform_0, window_bounds = array<i64: 8, 4>}, {pipeline_mode = #tpu.pipeline_mode<synchronous>, transform_indices = @transform_1, window_bounds = array<i64: 4, 128>}, {pipeline_mode = #tpu.pipeline_mode<synchronous>, transform_indices = @transform_2, window_bounds = array<i64: 1, 128>}, {pipeline_mode = #tpu.pipeline_mode<synchronous>, transform_indices = @transform_3, window_bounds = array<i64: 128, 128>}, {transform_indices = @transform_4, window_bounds = array<i64: 8, 128>}]} {
    %c0 = arith.constant 0 : index
    %c0_0 = arith.constant 0 : index
    %0 = vector.load %arg1[%c0, %c0_0] : memref<8x4xf32, #tpu.memory_space<vmem>>, vector<8x4xf32>
    %c0_1 = arith.constant 0 : index
    %c0_2 = arith.constant 0 : index
    %1 = vector.load %arg2[%c0_1, %c0_2] : memref<4x128xf32, #tpu.memory_space<vmem>>, vector<4x128xf32>
    %cst = arith.constant dense<0.000000e+00> : vector<8x128xf32>
    %2 = tpu.matmul %0, %1, %cst {dimension_numbers = #tpu.dot_dimension_numbers<[1], [0], [0], [1], [0, 0, 1, 1], [], []>} : vector<8x4xf32>, vector<4x128xf32>, vector<8x128xf32> -> vector<8x128xf32>
    %c0_3 = arith.constant 0 : index
    %c0_4 = arith.constant 0 : index
    %3 = vector.load %arg3[%c0_3, %c0_4] : memref<1x128xf32, #tpu.memory_space<vmem>>, vector<1x128xf32>
    %4 = vector.broadcast %3 : vector<1x128xf32> to vector<8x128xf32>
    %5 = arith.addf %2, %4 : vector<8x128xf32>
    %cst_5 = arith.constant 0.000000e+00 : f32
    %6 = vector.broadcast %cst_5 : f32 to vector<8x128xf32>
    %7 = arith.maximumf %5, %6 : vector<8x128xf32>
    %c0_6 = arith.constant 0 : index
    %c0_7 = arith.constant 0 : index
    %8 = vector.load %arg4[%c0_6, %c0_7] : memref<128x128xf32, #tpu.memory_space<vmem>>, vector<128x128xf32>
    %cst_8 = arith.constant dense<0.000000e+00> : vector<8x128xf32>
    %9 = tpu.matmul %7, %8, %cst_8 {dimension_numbers = #tpu.dot_dimension_numbers<[1], [0], [0], [1], [0, 0, 1, 1], [], []>} : vector<8x128xf32>, vector<128x128xf32>, vector<8x128xf32> -> vector<8x128xf32>
    %10 = tpu.iota {dimensions = array<i32: 1>} : vector<8x128xi32>
    %c6_i32 = arith.constant 6 : i32
    %11 = vector.broadcast %c6_i32 : i32 to vector<8x128xi32>
    %12 = arith.cmpi slt, %10, %11 : vector<8x128xi32>
    %cst_9 = arith.constant 0xFF800000 : f32
    %13 = vector.broadcast %cst_9 : f32 to vector<8x128xf32>
    %14 = arith.select %12, %9, %13 : vector<8x128xi1>, vector<8x128xf32>
    %cst_10 = arith.constant dense<0xFF800000> : vector<8xf32>
    %15 = vector.multi_reduction <maximumf>, %14, %cst_10 [1] : vector<8x128xf32> to vector<8xf32>
    %16 = vector.shape_cast %15 : vector<8xf32> to vector<8x1xf32>
    %17 = vector.broadcast %16 : vector<8x1xf32> to vector<8x128xf32>
    %18 = arith.subf %14, %17 : vector<8x128xf32>
    %19 = math.exp %18 : vector<8x128xf32>
    %cst_11 = arith.constant dense<0.000000e+00> : vector<8xf32>
    %20 = vector.multi_reduction <add>, %19, %cst_11 [1] : vector<8x128xf32> to vector<8xf32>
    %21 = vector.shape_cast %20 : vector<8xf32> to vector<8x1xf32>
    %22 = vector.broadcast %21 : vector<8x1xf32> to vector<8x128xf32>
    %23 = arith.divf %19, %22 : vector<8x128xf32>
    %c6_i32_12 = arith.constant 6 : i32
    %24 = vector.broadcast %c6_i32_12 : i32 to vector<8x128xi32>
    %25 = arith.cmpi eq, %10, %24 : vector<8x128xi32>
    %c6_i32_13 = arith.constant 6 : i32
    %26 = vector.broadcast %c6_i32_13 : i32 to vector<8x128xi32>
    %27 = arith.cmpi slt, %10, %26 : vector<8x128xi32>
    %cst_14 = arith.constant 0.000000e+00 : f32
    %28 = vector.broadcast %cst_14 : f32 to vector<8x128xf32>
    %29 = arith.select %27, %23, %28 : vector<8x128xi1>, vector<8x128xf32>
    %30 = arith.select %25, %9, %29 : vector<8x128xi1>, vector<8x128xf32>
    %c0_15 = arith.constant 0 : index
    %c0_16 = arith.constant 0 : index
    %31 = vector.load %arg5[%c0_15, %c0_16] : memref<8x128xf32, #tpu.memory_space<vmem>>, vector<8x128xf32>
    tpu.vector_store %arg5[%c0_15, %c0_16], %30 {strides = array<i32>} : memref<8x128xf32, #tpu.memory_space<vmem>>, vector<8x128xf32>,
    return
  }
  func.func @transform_0(%arg0: i32) -> (i32, i32) {
    %c0_i32 = arith.constant 0 : i32
    %c0_i32_0 = arith.constant 0 : i32
    return %arg0, %c0_i32 : i32, i32
  }
  func.func @transform_1(%arg0: i32) -> (i32, i32) {
    %c0_i32 = arith.constant 0 : i32
    %c0_i32_0 = arith.constant 0 : i32
    %c0_i32_1 = arith.constant 0 : i32
    return %c0_i32, %c0_i32_0 : i32, i32
  }
  func.func @transform_2(%arg0: i32) -> (i32, i32) {
    %c0_i32 = arith.constant 0 : i32
    %c0_i32_0 = arith.constant 0 : i32
    %c0_i32_1 = arith.constant 0 : i32
    return %c0_i32, %c0_i32_0 : i32, i32
  }
  func.func @transform_3(%arg0: i32) -> (i32, i32) {
    %c0_i32 = arith.constant 0 : i32
    %c0_i32_0 = arith.constant 0 : i32
    %c0_i32_1 = arith.constant 0 : i32
    return %c0_i32, %c0_i32_0 : i32, i32
  }
  func.func @transform_4(%arg0: i32) -> (i32, i32) {
    %c0_i32 = arith.constant 0 : i32
    %c0_i32_0 = arith.constant 0 : i32
    return %arg0, %c0_i32 : i32, i32
  }
}

</mosaic_0001>

<llo_original>
// kernel: tpu_custom_call.1
$region0: #{tpu_custom_call.1}
  #allocation0 [shape = 'u32[]', space=smem, size = 0x4, offset = 0x4, fixed_abs, tag = 'smem constant byte address 0x4 - core index']
  #allocation1 [shape = 'u32[72,128]{1,0:T(1,128)}', space=vmem, size = 0x9000, scoped, tag = 'internal scratch']
  %s0 = inlined_call_operand.hbm [shape: f32[2,4], index: 0, kind: input, shape index: {}]
  %s1 = inlined_call_operand.hbm [shape: f32[4,128], index: 1, kind: input, shape index: {}]
  %s2 = inlined_call_operand.vmem [shape: f32[1,128], index: 2, kind: input, shape index: {}]
  %s3 = inlined_call_operand.hbm [shape: f32[128,128], index: 3, kind: input, shape index: {}]
  %s4 = inlined_call_operand.hbm [shape: f32[2,128], index: 4, kind: output, shape index: {}]
  %s5 = sld [smem:[#allocation0]]
  $region38: #{tpu_custom_call.1} parent=0
    _
  %s7 = ssub.s32 1, %s5
  %s8 = scalar_select 0, %s7, %s5
  $region1: #{tpu_custom_call.1} parent=0
    #allocation2 [shape = 'u8[4096]{0}', space=vmem, size = 0x1000, scoped, tag = 'input window, operand 0, single buffered']
    #allocation3 [shape = 's32[1]{0}', space=sflag, size = 0x4, scoped, tag = 'scoped memory for tpu_custom_call.1']
    #allocation4 [shape = 's32[1]{0}', space=sflag, size = 0x4, scoped, tag = 'scoped memory for tpu_custom_call.1']
    #allocation5 [shape = 'u8[2048]{0}', space=vmem, size = 0x800, scoped, tag = 'input window, operand 1, single buffered']
    #allocation6 [shape = 's32[1]{0}', space=sflag, size = 0x4, scoped, tag = 'scoped memory for tpu_custom_call.1']
    #allocation7 [shape = 'u8[65536]{0}', space=vmem, size = 0x10000, scoped, tag = 'input window, operand 3, single buffered']
    #allocation8 [shape = 'u8[4096]{0}', space=vmem, size = 0x1000, scoped, tag = 'output window, operand 0, single buffered']
    %9 = vsyncpa [#allocation3], 0
    %10 = vsyncpa [#allocation6], 0
    %11 = vsyncpa [#allocation4], 0
    // Predicated region
    $region2: #{tpu_custom_call.1} parent=1 // pred_check
      _
    $region3: #{tpu_custom_call.1} parent=1 // pred_check_branch
      %13 = sbr.rel (0) target = $region5
    $region4: #{tpu_custom_call.1} parent=1 // pred_region
      %15 = vsyncadd [#allocation3], 96
      %s16 = sshll.u32 %s0, 4
      %s17 = int_to_ptr.hbm [resolvable:$true] %s16
      %s18 = sshll.u32 [#allocation2], 4
      %s19 = int_to_ptr.vmem [resolvable:$true] %s18
      %24 = dma.hbm_to_vmem [thread:$0]  %s17, 32, %s19, [#allocation3], 32, 32, 2
    $region5: #{tpu_custom_call.1} parent=1 // pred_fallthru
      _
    // Predicated region
    $region6: #{tpu_custom_call.1} parent=1 // pred_check
      _
    $region7: #{tpu_custom_call.1} parent=1 // pred_check_branch
      %26 = sbr.rel (0) target = $region9
    $region8: #{tpu_custom_call.1} parent=1 // pred_region
      %28 = vsyncadd [#allocation6], 0
      %s30 = sshll.u32 %s1, 4
      %s31 = int_to_ptr.hbm [resolvable:$true] %s30
      %s32 = sshll.u32 [#allocation5], 4
      %s33 = int_to_ptr.vmem [resolvable:$true] %s32
      %35 = dma.hbm_to_vmem [thread:$0]  %s31, 64, %s33, [#allocation6]
    $region9: #{tpu_custom_call.1} parent=1 // pred_fallthru
      _
    // Predicated region
    $region10: #{tpu_custom_call.1} parent=1 // pred_check
      _
    $region11: #{tpu_custom_call.1} parent=1 // pred_check_branch
      %37 = sbr.rel (0) target = $region13
    $region12: #{tpu_custom_call.1} parent=1 // pred_region
      _
    $region13: #{tpu_custom_call.1} parent=1 // pred_fallthru
      _
    // Predicated region
    $region14: #{tpu_custom_call.1} parent=1 // pred_check
      _
    $region15: #{tpu_custom_call.1} parent=1 // pred_check_branch
      %39 = sbr.rel (0) target = $region17
    $region16: #{tpu_custom_call.1} parent=1 // pred_region
      %41 = vsyncadd [#allocation6], 0
      %s42 = sshll.u32 %s3, 4
      %s43 = int_to_ptr.hbm [resolvable:$true] %s42
      %s44 = sshll.u32 [#allocation7], 4
      %s45 = int_to_ptr.vmem [resolvable:$true] %s44
      %50 = dma.hbm_to_vmem [thread:$0]  %s43, 2048, %s45, [#allocation6], 128, 128, 8
    $region17: #{tpu_custom_call.1} parent=1 // pred_fallthru
      _
    // Predicated region
    $region18: #{tpu_custom_call.1} parent=1 // pred_check
      _
    $region19: #{tpu_custom_call.1} parent=1 // pred_check_branch
      %52 = sbr.rel (0) target = $region21
    $region20: #{tpu_custom_call.1} parent=1 // pred_region
      %54 = dma.done [#allocation3], 128
    $region21: #{tpu_custom_call.1} parent=1 // pred_fallthru
      _
    // Predicated region
    $region22: #{tpu_custom_call.1} parent=1 // pred_check
      _
    $region23: #{tpu_custom_call.1} parent=1 // pred_check_branch
      %56 = sbr.rel (0) target = $region25
    $region24: #{tpu_custom_call.1} parent=1 // pred_region
      %58 = dma.done [#allocation6], 64
    $region25: #{tpu_custom_call.1} parent=1 // pred_fallthru
      _
    // Predicated region
    $region26: #{tpu_custom_call.1} parent=1 // pred_check
      _
    $region27: #{tpu_custom_call.1} parent=1 // pred_check_branch
      %60 = sbr.rel (0) target = $region29
    $region28: #{tpu_custom_call.1} parent=1 // pred_region
      %62 = dma.done [#allocation6], 2048
    $region29: #{tpu_custom_call.1} parent=1 // pred_fallthru
      _
    %v63 = vld [vmem:[#allocation2] sm:$0xff]
    %v64 = vld [vmem:[#allocation5] sm:$0xf]
    %v65 = vld [vmem:[%s2] sm:$0x1]
    %v67 = vperm.slane %v65, 0
    %vm69 = vcmask 31744
    %v71 = vsel %vm69, %v63, 0
    %vm73 = vcmask 1043456
    %v75 = vsel %vm73, %v64, 0
    %77 = vmatpush.msra.mxu0 0.0
    %78 = vmatpush.msra.mxu0 0.0
    %79 = vmatpush.msra.mxu0 0.0
    %80 = vmatpush.msra.mxu0 0.0
    %81 = vmatpush.msra.mxu0 0.0
    %82 = vmatpush.msra.mxu0 0.0
    %83 = vmatpush.msra.mxu0 0.0
    %84 = vmatpush.msra.mxu0 0.0
    %85 = vmatpush.msra.mxu0 0.0
    %86 = vmatpush.msra.mxu0 0.0
    %87 = vmatpush.msra.mxu0 0.0
    %88 = vmatpush.msra.mxu0 0.0
    %89 = vmatpush.msra.mxu0 0.0
    %90 = vmatpush.msra.mxu0 0.0
    %91 = vmatpush.msra.mxu0 0.0
    %92 = vmatpush.msra.mxu0 %v75
    %93 = vmatmul.f32.gmra.mxu0 %v71
    %v94 = vpop.f32.mrf.mxu0
    %v95 = vadd.f32 %v67, %v94
    %96 = vdwg.mxu0
    %v97 = vmax.f32 %v95, 0.0
    %v98 = vld [vmem:[#allocation7] sm:$0xff]
    %v99 = vld [vmem:[#allocation7 + $0x8] sm:$0xff]
    %v100 = vld [vmem:[#allocation7 + $0x10] sm:$0xff]
    %v101 = vld [vmem:[#allocation7 + $0x18] sm:$0xff]
    %v102 = vld [vmem:[#allocation7 + $0x20] sm:$0xff]
    %v103 = vld [vmem:[#allocation7 + $0x28] sm:$0xff]
    %v104 = vld [vmem:[#allocation7 + $0x30] sm:$0xff]
    %v105 = vld [vmem:[#allocation7 + $0x38] sm:$0xff]
    %v106 = vld [vmem:[#allocation7 + $0x40] sm:$0xff]
    %v107 = vld [vmem:[#allocation7 + $0x48] sm:$0xff]
    %v108 = vld [vmem:[#allocation7 + $0x50] sm:$0xff]
    %v109 = vld [vmem:[#allocation7 + $0x58] sm:$0xff]
    %v110 = vld [vmem:[#allocation7 + $0x60] sm:$0xff]
    %v111 = vld [vmem:[#allocation7 + $0x68] sm:$0xff]
    %v112 = vld [vmem:[#allocation7 + $0x70] sm:$0xff]
    %v113 = vld [vmem:[#allocation7 + $0x78] sm:$0xff]
    %114 = vmatpush.msra.mxu0 %v113
    %115 = vmatpush.msra.mxu0 %v112
    %116 = vmatpush.msra.mxu0 %v111
    %117 = vmatpush.msra.mxu0 %v110
    %118 = vmatpush.msra.mxu0 %v109
    %119 = vmatpush.msra.mxu0 %v108
    %120 = vmatpush.msra.mxu0 %v107
    %121 = vmatpush.msra.mxu0 %v106
    %122 = vmatpush.msra.mxu0 %v105
    %123 = vmatpush.msra.mxu0 %v104
    %124 = vmatpush.msra.mxu0 %v103
    %125 = vmatpush.msra.mxu0 %v102
    %126 = vmatpush.msra.mxu0 %v101
    %127 = vmatpush.msra.mxu0 %v100
    %128 = vmatpush.msra.mxu0 %v99
    %129 = vmatpush.msra.mxu0 %v98
    %130 = vmatmul.f32.gmra.mxu0 %v97
    %v131 = vpop.f32.mrf.mxu0
    %v132 = vadd.f32 0.0, %v131
    %133 = vdwg.mxu0
    %v134 = vlaneseq
    %v135 = vand.u32 %v134, 127
    %vm136 = vcmp.lt.s32.totalorder %v135, 6
    %v137 = vsel %vm136, %v132, -inf
    %138 = vmax.xlane.f32.xlu0 %v137
    %v139 = vpop.xlane.xlu0 %138
    %v140 = vsub.f32 %v137, %v139
    %v141 = vmul.f32 %v140, 1.442695
    %v142 = vpow.pop %v141
    %143 = vadd.xlane.f32.xlu0 %v142
    %v144 = vpop.xlane.xlu0 %143
    %v145 = vrcp.pop %v144
    %v146 = vmul.f32 %v144, %v145
    %v147 = vsub.f32 1.0, %v146
    %v148 = vmul.f32 %v145, %v147
    %v149 = vadd.f32 %v145, %v148
    %vm150 = vweird.f32 %v144
    %vm151 = vweird.f32 %v145
    %vm152 = vmor %vm150, %vm151
    %v153 = vsel %vm152, %v145, %v149
    %v154 = vand.u32 2147483647, %v144
    %vm155 = vcmp.eq.f32.partialorder %v154, 8.507059e+37
    %v156 = vand.u32 %v144, 2147483648
    %v157 = vor.u32 1.1754944e-38, %v156
    %v158 = vsel %vm155, %v157, %v153
    %v159 = vmul.f32 %v142, %v158
    %vm160 = vcmp.eq.s32.totalorder %v135, 6
    %v161 = vsel %vm136, %v159, 0.0
    %v162 = vsel %vm160, %v132, %v161
    %163 = vst [vmem:[#allocation8] sm:$0xff] %v162
    // Predicated region
    $region30: #{tpu_custom_call.1} parent=1 // pred_check
      _
    $region31: #{tpu_custom_call.1} parent=1 // pred_check_branch
      %165 = sbr.rel (0) target = $region33
    $region32: #{tpu_custom_call.1} parent=1 // pred_region
      %167 = vsyncadd [#allocation4], 96
      %s168 = sshll.u32 [#allocation8], 4
      %s169 = int_to_ptr.vmem [resolvable:$true] %s168
      %s170 = sshll.u32 %s4, 4
      %s171 = int_to_ptr.hbm [resolvable:$true] %s170
      %176 = dma.vmem_to_hbm [thread:$0]  %s169, 32, %s171, [#allocation4], 32, 32, 2
    $region33: #{tpu_custom_call.1} parent=1 // pred_fallthru
      _
    // Predicated region
    $region34: #{tpu_custom_call.1} parent=1 // pred_check
      _
    $region35: #{tpu_custom_call.1} parent=1 // pred_check_branch
      %178 = sbr.rel (0) target = $region37
    $region36: #{tpu_custom_call.1} parent=1 // pred_region
      %180 = dma.done [#allocation4], 128
    $region37: #{tpu_custom_call.1} parent=1 // pred_fallthru
      _
    %181 = vsyncpa [#allocation3], 1
    %182 = vsyncpa [#allocation6], 1
    %183 = vsyncpa [#allocation4], 1

</llo_original>
